<compile_context>
chip_gen: v5e
topology: v5e:2x2
jax: 0.10.0
libtpu: 0.0.40
codegen_flags: <defaults>
</compile_context>

<pallas_src>
import functools
import math

import jax
import jax.numpy as jnp
from jax.experimental import pallas as pl
from jax.experimental.pallas import tpu as pltpu


def _round_up(v, m):
    return ((v + m - 1) // m) * m


def _tv_flat_kernel(mask_ref, x_ref, o_ref, *, W, HW, chunk, b_tile, B,
                    do_h, do_v, ragged_b, ragged_hw, use_roll, upcast):
    """Partial TV sum for one (row-block, HW-chunk) tile.

    mask_ref: (2, chunk)  row 0 = horizontal no-row-wrap mask,
                          row 1 = vertical in-chunk mask (0/1, compute dtype)
    x_ref:    (b_tile, chunk) slab chunk
    o_ref:    (1, 1) SMEM f32 partial sum
    """
    x = x_ref[...]
    if upcast:
        x = x.astype(jnp.float32)
    zero = jnp.zeros((), x.dtype)

    # Ragged last row-block: zero slabs beyond the true batch*channel count.
    if ragged_b:
        row = (pl.program_id(0) * b_tile
               + jax.lax.broadcasted_iota(jnp.int32, (b_tile, 1), 0))
        x = jnp.where(row < B, x, zero)

    # Ragged last HW chunk: zero positions beyond the true image extent.
    if ragged_hw:
        col = (pl.program_id(1) * chunk
               + jax.lax.broadcasted_iota(jnp.int32, (1, chunk), 1))
        x = jnp.where(col < HW, x, zero)

    total = jnp.zeros((), jnp.float32)

    # ---- horizontal (W-direction) neighbours: adjacent flat positions -------
    if do_h:
        if use_roll:
            # XLU rotate (vector-extended slot) instead of an unaligned lane
            # slice; wrap-around pairs are killed by the row-end mask.
            nbr = pltpu.roll(x, shift=chunk - 1, axis=1)   # nbr[p] = x[(p+1) % chunk]
            dh = jnp.abs(nbr - x) * mask_ref[0:1, :]
            total = total + jnp.sum(dh, dtype=jnp.float32)
        else:
            dh = jnp.abs(x[:, 1:] - x[:, :chunk - 1]) * mask_ref[0:1, :chunk - 1]
            total = total + jnp.sum(dh, dtype=jnp.float32)

    # ---- vertical (H-direction) neighbours: flat positions W apart ----------
    # (Pairs straddling a chunk boundary are added back in the wrapper.)
    if do_v:
        if use_roll:
            nbr = pltpu.roll(x, shift=chunk - W, axis=1)   # nbr[p] = x[(p+W) % chunk]
            dv = jnp.abs(nbr - x) * mask_ref[1:2, :]
            if ragged_hw:
                colv = (pl.program_id(1) * chunk
                        + jax.lax.broadcasted_iota(jnp.int32, (1, chunk), 1))
                dv = jnp.where(colv < HW - W, dv, zero)    # no pairs into OOB rows
            total = total + jnp.sum(dv, dtype=jnp.float32)
        else:
            dv = jnp.abs(x[:, W:] - x[:, :chunk - W])      # never wraps, no mask
            total = total + jnp.sum(dv, dtype=jnp.float32)

    o_ref[0, 0] = total


def tv_loss(x, *, target_block_bytes=4 * 1024 * 1024):
    """x: (N, C, H, W). Returns scalar float32 sum(|dH|) + sum(|dW|).

    target_block_bytes ~4 MiB: within the 2-4 MiB budget advised for v7x
    (64 MiB VMEM, 2 TCs) and the 4-8 MiB sweet spot for v5e/v6e.
    """
    N, C, H, W = x.shape
    B = N * C
    HW = H * W
    if B == 0 or HW == 0 or (H <= 1 and W <= 1):
        return jnp.zeros((), jnp.float32)

    in_dtype = x.dtype
    itemsize = x.dtype.itemsize
    # bf16/f32 stay native on the VPU; anything else upcasts in-kernel.
    upcast = in_dtype not in (jnp.float32, jnp.bfloat16)
    compute_dtype = jnp.float32 if upcast else in_dtype
    comp_itemsize = 4 if upcast else itemsize

    x_flat = x.reshape(B, HW)

    # ---------------- block sizing (no host-side padding) --------------------
    min_rows = 8 if B >= 8 else B            # sublane-aligned minimum row block
    slab_bytes = HW * itemsize

    if min_rows * slab_bytes > target_block_bytes and H > 1:
        # Even a minimal row block of full slabs is too big: chunk the H*W axis
        # in multiples of lcm(W, 128) (whole image rows, 128-lane aligned so the
        # wrap mask is identical for every chunk and pltpu.roll stays cheap).
        unit = W * 128 // math.gcd(W, 128)
        units = max(1, target_block_bytes // max(1, min_rows * unit * itemsize))
        chunk = units * unit
        if chunk >= HW:
            chunk = HW
        b_tile = min_rows
    else:
        chunk = HW
        rows = max(min_rows, target_block_bytes // max(1, slab_bytes))
        if B >= 16:
            # Keep >=2 row blocks so the parallel grid axis can span both v7x TCs.
            rows = min(rows, _round_up(pl.cdiv(B, 2), 8))
        if rows >= B:
            b_tile = B                       # full dim -> exempt from 8-alignment
        else:
            b_tile = max(8, (rows // 8) * 8)

    nb = pl.cdiv(B, b_tile)
    nchunks = pl.cdiv(HW, chunk)
    ragged_b = (B % b_tile) != 0
    ragged_hw = (HW % chunk) != 0
    use_roll = (chunk % 128) == 0
    # Ragged HW only ever happens on the chunked (128-aligned) path.
    assert not (ragged_hw and not use_roll)
    do_h = W > 1
    do_v = (H > 1) and (chunk > W)

    # 0/1 masks over in-chunk flat positions p:
    #   row 0: keep horizontal pair (p, p+1) iff p is not at the end of an image row
    #   row 1: keep vertical   pair (p, p+W) iff p+W is still inside this chunk
    pos = jnp.arange(chunk, dtype=jnp.int32)
    hmask = (pos % W) != (W - 1)
    vmask = pos < (chunk - W)
    masks = jnp.stack([hmask, vmask]).astype(compute_dtype)

    kernel = functools.partial(
        _tv_flat_kernel, W=W, HW=HW, chunk=chunk, b_tile=b_tile, B=B,
        do_h=do_h, do_v=do_v, ragged_b=ragged_b, ragged_hw=ragged_hw,
        use_roll=use_roll, upcast=upcast)

    # VMEM budget from the actual footprint: 2x double-buffered input block +
    # ~6 elementwise temporaries + mask + slack; clamped to stay v7x-safe.
    block_in = b_tile * chunk * itemsize
    block_cp = b_tile * chunk * comp_itemsize
    vmem_limit = 2 * block_in + 6 * block_cp + 4 * chunk * comp_itemsize + (2 << 20)
    vmem_limit = int(max(16 << 20, min(vmem_limit, 48 << 20)))

    partials = pl.pallas_call(
        kernel,
        out_shape=jax.ShapeDtypeStruct((nb, nchunks), jnp.float32),
        grid_spec=pltpu.PrefetchScalarGridSpec(
            num_scalar_prefetch=0,
            grid=(nb, nchunks),
            in_specs=[
                pl.BlockSpec((2, chunk), lambda i, j: (0, 0)),       # masks (reused)
                pl.BlockSpec((b_tile, chunk), lambda i, j: (i, j)),  # slab chunk
            ],
            out_specs=pl.BlockSpec(
                (1, 1), lambda i, j: (i, j), memory_space=pltpu.SMEM),
        ),
        compiler_params=pltpu.CompilerParams(
            dimension_semantics=("parallel", "parallel"),  # per-block partials
            vmem_limit_bytes=vmem_limit,
        ),
        cost_estimate=pl.CostEstimate(
            flops=8 * B * HW,
            transcendentals=0,
            bytes_accessed=B * HW * itemsize + 2 * chunk * comp_itemsize
            + nb * nchunks * 4,
        ),
    )(masks, x_flat)

    loss = jnp.sum(partials)

    # Vertical pairs straddling chunk boundaries (tiny, only when HW was chunked).
    if nchunks > 1:
        rows_per_chunk = chunk // W
        x3 = x.reshape(B, H, W)
        bidx = jnp.arange(rows_per_chunk, H, rows_per_chunk, dtype=jnp.int32)
        prev = x3[:, bidx - 1, :].astype(jnp.float32)
        nxt = x3[:, bidx, :].astype(jnp.float32)
        loss = loss + jnp.sum(jnp.abs(nxt - prev))

    return loss


def tv_loss_ref(x):
    x = x.astype(jnp.float32)
    h_diff = x[:, :, 1:, :] - x[:, :, :-1, :]
    w_diff = x[:, :, :, 1:] - x[:, :, :, :-1]
    return jnp.sum(jnp.abs(h_diff)) + jnp.sum(jnp.abs(w_diff))


if __name__ == "__main__":
    key = jax.random.PRNGKey(0)
    k1, k2, k3, k4 = jax.random.split(key, 4)

    # 1) canonical small case: single block, roll path, f32
    x1 = jax.random.normal(k1, (2, 4, 16, 16), dtype=jnp.float32)
    out1 = tv_loss(x1)
    jax.block_until_ready(out1)
    ref1 = tv_loss_ref(x1)
    assert jnp.allclose(out1, ref1, rtol=1e-4, atol=1e-2), (out1, ref1)

    # 2) bf16 input: native bf16 VPU math, f32 accumulation
    x2 = jax.random.normal(k2, (2, 3, 16, 128), dtype=jnp.float32).astype(jnp.bfloat16)
    out2 = tv_loss(x2)
    jax.block_until_ready(out2)
    ref2 = tv_loss_ref(x2)
    assert jnp.allclose(out2, ref2, rtol=2e-2, atol=1.0), (out2, ref2)

    # 3) forced HW chunking: ragged last chunk + wrapper boundary correction
    x3 = jax.random.normal(k3, (2, 2, 50, 48), dtype=jnp.float32)
    out3 = tv_loss(x3, target_block_bytes=8 * 1024)
    jax.block_until_ready(out3)
    ref3 = tv_loss_ref(x3)
    assert jnp.allclose(out3, ref3, rtol=1e-4, atol=1e-1), (out3, ref3)

    # 4) ragged batch dim (B=20 -> two 16-row blocks, last one masked), slice path
    x4 = jax.random.normal(k4, (4, 5, 8, 24), dtype=jnp.float32)
    out4 = tv_loss(x4)
    jax.block_until_ready(out4)
    ref4 = tv_loss_ref(x4)
    assert jnp.allclose(out4, ref4, rtol=1e-4, atol=1e-1), (out4, ref4)

    print("KERNEL_OK")
</pallas_src>

<mosaic_0001>
module attributes {stable_mosaic.version = 11 : i64} {
  func.func @_tv_flat_kernel(%arg0: i32, %arg1: i32, %arg2: memref<2x256xf32, #tpu.memory_space<vmem>>, %arg3: memref<8x256xf32, #tpu.memory_space<vmem>>, %arg4: memref<1x1xf32, #tpu.memory_space<smem>>) attributes {dimension_semantics = [#tpu.dimension_semantics<parallel>, #tpu.dimension_semantics<parallel>], iteration_bounds = array<i64: 1, 1>, scalar_prefetch = 0 : i64, scratch_operands = 0 : i64, tpu.core_type = #tpu.core_type<tc>, window_params = [{pipeline_mode = #tpu.pipeline_mode<synchronous>, transform_indices = @transform_0, window_bounds = array<i64: 2, 256>}, {transform_indices = @transform_1, window_bounds = array<i64: 8, 256>}, {transform_indices = @transform_2, window_bounds = array<i64: 1, 1>}]} {
    %c0 = arith.constant 0 : index
    %c0_0 = arith.constant 0 : index
    %0 = vector.load %arg3[%c0, %c0_0] : memref<8x256xf32, #tpu.memory_space<vmem>>, vector<8x256xf32>
    %c255_i32 = arith.constant 255 : i32
    %1 = tpu.dynamic_rotate %0 by %c255_i32 dim 1 : vector<8x256xf32>, i32 -> vector<8x256xf32>
    %2 = arith.subf %1, %0 : vector<8x256xf32>
    %3 = math.absf %2 : vector<8x256xf32>
    %c0_1 = arith.constant 0 : index
    %c0_2 = arith.constant 0 : index
    %4 = vector.load %arg2[%c0_1, %c0_2] : memref<2x256xf32, #tpu.memory_space<vmem>>, vector<1x256xf32>
    %5 = vector.broadcast %4 : vector<1x256xf32> to vector<8x256xf32>
    %6 = arith.mulf %3, %5 : vector<8x256xf32>
    %7 = vector.shape_cast %6 : vector<8x256xf32> to vector<1x8x256xf32>
    %cst = arith.constant dense<0.000000e+00> : vector<1xf32>
    %8 = vector.multi_reduction <add>, %7, %cst [1, 2] : vector<1x8x256xf32> to vector<1xf32>
    %9 = vector.shape_cast %8 : vector<1xf32> to vector<1x1x1xf32>
    %10 = vector.extract %9[0, 0, 0] : f32 from vector<1x1x1xf32>
    %cst_3 = arith.constant 0.000000e+00 : f32
    %11 = arith.addf %cst_3, %10 : f32
    %c240_i32 = arith.constant 240 : i32
    %12 = tpu.dynamic_rotate %0 by %c240_i32 dim 1 : vector<8x256xf32>, i32 -> vector<8x256xf32>
    %13 = arith.subf %12, %0 : vector<8x256xf32>
    %14 = math.absf %13 : vector<8x256xf32>
    %c1 = arith.constant 1 : index
    %c0_4 = arith.constant 0 : index
    %15 = vector.load %arg2[%c1, %c0_4] : memref<2x256xf32, #tpu.memory_space<vmem>>, vector<1x256xf32>
    %16 = vector.broadcast %15 : vector<1x256xf32> to vector<8x256xf32>
    %17 = arith.mulf %14, %16 : vector<8x256xf32>
    %18 = vector.shape_cast %17 : vector<8x256xf32> to vector<1x8x256xf32>
    %cst_5 = arith.constant dense<0.000000e+00> : vector<1xf32>
    %19 = vector.multi_reduction <add>, %18, %cst_5 [1, 2] : vector<1x8x256xf32> to vector<1xf32>
    %20 = vector.shape_cast %19 : vector<1xf32> to vector<1x1x1xf32>
    %21 = vector.extract %20[0, 0, 0] : f32 from vector<1x1x1xf32>
    %22 = arith.addf %11, %21 : f32
    %c0_6 = arith.constant 0 : index
    %c0_7 = arith.constant 0 : index
    %23 = memref.load %arg4[%c0_6, %c0_7] : memref<1x1xf32, #tpu.memory_space<smem>>
    memref.store %22, %arg4[%c0_6, %c0_7] : memref<1x1xf32, #tpu.memory_space<smem>>
    return
  }
  func.func @transform_0(%arg0: i32, %arg1: i32) -> (i32, i32) {
    %c0_i32 = arith.constant 0 : i32
    %c0_i32_0 = arith.constant 0 : i32
    %c0_i32_1 = arith.constant 0 : i32
    return %c0_i32, %c0_i32_0 : i32, i32
  }
  func.func @transform_1(%arg0: i32, %arg1: i32) -> (i32, i32) {
    %c0_i32 = arith.constant 0 : i32
    return %arg0, %arg1 : i32, i32
  }
  func.func @transform_2(%arg0: i32, %arg1: i32) -> (i32, i32) {
    %c0_i32 = arith.constant 0 : i32
    return %arg0, %arg1 : i32, i32
  }
}

</mosaic_0001>

<llo_original>
// kernel: tpu_custom_call.1
$region0: #{tpu_custom_call.1}
  #allocation0 [shape = 'u32[]', space=smem, size = 0x4, offset = 0x4, fixed_abs, tag = 'smem constant byte address 0x4 - core index']
  #allocation1 [shape = 'u32[72,128]{1,0:T(1,128)}', space=vmem, size = 0x9000, scoped, tag = 'internal scratch']
  %s0 = inlined_call_operand.hbm [shape: f32[2,256], index: 0, kind: input, shape index: {}]
  %s1 = inlined_call_operand.hbm [shape: f32[8,256], index: 1, kind: input, shape index: {}]
  %s2 = inlined_call_operand.hbm [shape: f32[1,1], index: 2, kind: output, shape index: {}]
  %s3 = sld [smem:[#allocation0]]
  $region26: #{tpu_custom_call.1} parent=0
    _
  %s5 = ssub.s32 1, %s3
  %s6 = scalar_select 0, %s5, %s3
  $region1: #{tpu_custom_call.1} parent=0
    #allocation2 [shape = 'u8[2048]{0}', space=vmem, size = 0x800, scoped, tag = 'input window, operand 0, single buffered']
    #allocation3 [shape = 's32[1]{0}', space=sflag, size = 0x4, scoped, tag = 'scoped memory for tpu_custom_call.1']
    #allocation4 [shape = 's32[1]{0}', space=sflag, size = 0x4, scoped, tag = 'scoped memory for tpu_custom_call.1']
    #allocation5 [shape = 'u8[8192]{0}', space=vmem, size = 0x2000, scoped, tag = 'input window, operand 1, single buffered']
    #allocation6 [shape = 's32[1]{0}', space=sflag, size = 0x4, scoped, tag = 'scoped memory for tpu_custom_call.1']
    #allocation7 [shape = 'u8[512]{0}', space=smem, size = 0x200, scoped, tag = 'output window, operand 0, single buffered']
    %7 = vsyncpa [#allocation3], 0
    %8 = vsyncpa [#allocation6], 0
    %9 = vsyncpa [#allocation4], 0
    // Predicated region
    $region2: #{tpu_custom_call.1} parent=1 // pred_check
      _
    $region3: #{tpu_custom_call.1} parent=1 // pred_check_branch
      %11 = sbr.rel (0) target = $region5
    $region4: #{tpu_custom_call.1} parent=1 // pred_region
      %13 = vsyncadd [#allocation3], 0
      %s15 = sshll.u32 %s0, 4
      %s16 = int_to_ptr.hbm [resolvable:$true] %s15
      %s17 = sshll.u32 [#allocation2], 4
      %s18 = int_to_ptr.vmem [resolvable:$true] %s17
      %20 = dma.hbm_to_vmem [thread:$0]  %s16, 64, %s18, [#allocation3]
    $region5: #{tpu_custom_call.1} parent=1 // pred_fallthru
      _
    // Predicated region
    $region6: #{tpu_custom_call.1} parent=1 // pred_check
      _
    $region7: #{tpu_custom_call.1} parent=1 // pred_check_branch
      %22 = sbr.rel (0) target = $region9
    $region8: #{tpu_custom_call.1} parent=1 // pred_region
      %24 = vsyncadd [#allocation6], 0
      %s26 = sshll.u32 %s1, 4
      %s27 = int_to_ptr.hbm [resolvable:$true] %s26
      %s28 = sshll.u32 [#allocation5], 4
      %s29 = int_to_ptr.vmem [resolvable:$true] %s28
      %31 = dma.hbm_to_vmem [thread:$0]  %s27, 256, %s29, [#allocation6]
    $region9: #{tpu_custom_call.1} parent=1 // pred_fallthru
      _
    // Predicated region
    $region10: #{tpu_custom_call.1} parent=1 // pred_check
      _
    $region11: #{tpu_custom_call.1} parent=1 // pred_check_branch
      %33 = sbr.rel (0) target = $region13
    $region12: #{tpu_custom_call.1} parent=1 // pred_region
      %35 = dma.done [#allocation3], 64
    $region13: #{tpu_custom_call.1} parent=1 // pred_fallthru
      _
    // Predicated region
    $region14: #{tpu_custom_call.1} parent=1 // pred_check
      _
    $region15: #{tpu_custom_call.1} parent=1 // pred_check_branch
      %37 = sbr.rel (0) target = $region17
    $region16: #{tpu_custom_call.1} parent=1 // pred_region
      %39 = dma.done [#allocation6], 256
    $region17: #{tpu_custom_call.1} parent=1 // pred_fallthru
      _
    %v40 = vld [vmem:[#allocation5] sm:$0xff]
    %v41 = vld [vmem:[#allocation5 + $0x8] sm:$0xff]
    %42 = vrot.lane.b32.xlu0 %v40, 127
    %v43 = vpop.permute.xlu0 %42
    %44 = vrot.lane.b32.xlu0 %v41, 127
    %v45 = vpop.permute.xlu0 %44
    %v46 = vlaneseq
    %v47 = vand.u32 %v46, 127
    %vm48 = vcmp.lt.s32.totalorder %v47, 127
    %v49 = vsel %vm48, %v43, %v45
    %v50 = vsel %vm48, %v45, %v43
    %v51 = vsub.f32 %v49, %v40
    %v52 = vsub.f32 %v50, %v41
    %v53 = vand.u32 2147483647, %v51
    %v54 = vand.u32 2147483647, %v52
    %v55 = vld [vmem:[#allocation2] ss:$2 sm:$0x3]
    %v57 = vperm.slane %v55, 0
    %v58 = vperm.slane %v55, 1
    %v61 = vmul.f32 %v53, %v57
    %v62 = vmul.f32 %v54, %v58
    %v63 = vadd.f32 %v61, %v62
    %64 = vadd.xlane.f32.xlu0 %v63
    %v65 = vpop.xlane.xlu0 %64
    %v66 = vrot.slane %v65, 4
    %v67 = vadd.f32 %v65, %v66
    %v68 = vrot.slane %v67, 2
    %v69 = vadd.f32 %v67, %v68
    %v70 = vrot.slane %v69, 1
    %v71 = vadd.f32 %v69, %v70
    %s72 = vtos %v71
    %s73 = sadd.f32 %s72, 0.0
    %74 = vrot.lane.b32.xlu0 %v40, 112
    %v75 = vpop.permute.xlu0 %74
    %76 = vrot.lane.b32.xlu0 %v41, 112
    %v77 = vpop.permute.xlu0 %76
    %vm78 = vcmp.lt.s32.totalorder %v47, 112
    %v79 = vsel %vm78, %v75, %v77
    %v80 = vsel %vm78, %v77, %v75
    %v81 = vsub.f32 %v79, %v40
    %v82 = vsub.f32 %v80, %v41
    %v83 = vand.u32 2147483647, %v81
    %v84 = vand.u32 2147483647, %v82
    %s85 = scalar_lea.vmem [#allocation2], 1
    %v86 = vld [vmem:[%s85] ss:$2 sm:$0x3]
    %v88 = vperm.slane %v86, 0
    %v89 = vperm.slane %v86, 1
    %v92 = vmul.f32 %v83, %v88
    %v93 = vmul.f32 %v84, %v89
    %v94 = vadd.f32 %v92, %v93
    %95 = vadd.xlane.f32.xlu0 %v94
    %v96 = vpop.xlane.xlu0 %95
    %v97 = vrot.slane %v96, 4
    %v98 = vadd.f32 %v96, %v97
    %v99 = vrot.slane %v98, 2
    %v100 = vadd.f32 %v98, %v99
    %v101 = vrot.slane %v100, 1
    %v102 = vadd.f32 %v100, %v101
    %s103 = vtos %v102
    %s104 = sadd.f32 %s73, %s103
    %s105 = scalar_lea.smem [#allocation7], 0
    %106 = sst [smem:[%s105]] %s104
    // Predicated region
    $region18: #{tpu_custom_call.1} parent=1 // pred_check
      _
    $region19: #{tpu_custom_call.1} parent=1 // pred_check_branch
      %108 = sbr.rel (0) target = $region21
    $region20: #{tpu_custom_call.1} parent=1 // pred_region
      %110 = vsyncadd [#allocation4], 0
      %s112 = sshll.u32 %s2, 4
      %s113 = int_to_ptr.hbm [resolvable:$true] %s112
      %115 = dma.smem_to_hbm [#allocation7], 16, %s113, [#allocation4]
    $region21: #{tpu_custom_call.1} parent=1 // pred_fallthru
      _
    // Predicated region
    $region22: #{tpu_custom_call.1} parent=1 // pred_check
      _
    $region23: #{tpu_custom_call.1} parent=1 // pred_check_branch
      %117 = sbr.rel (0) target = $region25
    $region24: #{tpu_custom_call.1} parent=1 // pred_region
      %119 = dma.done [#allocation4], 16
    $region25: #{tpu_custom_call.1} parent=1 // pred_fallthru
      _
    %120 = sfence
    %121 = vsyncpa [#allocation3], 1
    %122 = vsyncpa [#allocation6], 1
    %123 = vsyncpa [#allocation4], 1

</llo_original>
